<compile_context>
chip_gen: v5e
topology: v5e:2x2
jax: 0.10.0
libtpu: 0.0.40
codegen_flags: <defaults>
</compile_context>

<pallas_src>
import functools
import math

import jax
import jax.numpy as jnp
from jax.experimental import pallas as pl
from jax.experimental.pallas import tpu as pltpu


def _round_up(x, m):
    return (x + m - 1) // m * m


def _embedding_kernel(ids_ref, lut_hbm, out_ref, slab, sems, *,
                      scale, t_tile, n_slots, vocab):
    """One grid step: gather t_tile embedding rows from HBM, scale, emit block."""
    base = pl.program_id(0) * t_tile

    def row_copy(t, slot):
        tok = ids_ref[base + t]
        tok = jnp.minimum(jnp.maximum(tok, 0), vocab - 1)   # scalar-unit clamp
        return pltpu.make_async_copy(
            lut_hbm.at[pl.ds(tok, 1)],   # (1, d_model) row of the table in HBM
            slab.at[pl.ds(t, 1)],        # (1, d_model) slot in the VMEM slab
            sems.at[slot],
        )

    # Prime: keep n_slots row gathers in flight.
    @pl.loop(0, n_slots)
    def _prime(t):
        row_copy(t, t & (n_slots - 1)).start()

    # Steady state: finish row t (freeing its semaphore slot), then immediately
    # launch row t + n_slots on the same slot.
    @pl.loop(0, t_tile)
    def _steady(t):
        slot = t & (n_slots - 1)
        pltpu.make_async_copy(
            lut_hbm.at[pl.ds(0, 1)],     # same-shape descriptor just for the wait
            slab.at[pl.ds(t, 1)],
            sems.at[slot],
        ).wait()

        @pl.when(t + n_slots < t_tile)
        def _():
            row_copy(t + n_slots, slot).start()

    # All rows have landed: scale once over the whole sublane/lane-dense tile and
    # emit a single dense (t_tile, d_model) output block.
    out_ref[...] = (slab[...] * scale).astype(out_ref.dtype)


def embeddings_forward(x, lut, *, tokens_per_tile=128, dma_slots=8):
    """Pallas implementation of Embeddings.forward: lut[x] * sqrt(d_model)."""
    batch, seq = x.shape
    vocab, d_model = lut.shape
    n_tok = batch * seq

    # Token tile: multiple of 8 (f32 sublane), capped at tokens_per_tile.
    t_tile = min(tokens_per_tile, _round_up(n_tok, 8))
    t_tile = _round_up(t_tile, 8)

    # Number of in-flight row DMAs: power of two, <= t_tile.
    n_slots = max(1, min(dma_slots, t_tile))
    n_slots = 1 << (n_slots.bit_length() - 1)

    n_pad = _round_up(n_tok, t_tile)
    ids = x.reshape(n_tok).astype(jnp.int32)
    if n_pad != n_tok:
        # Padded rows gather lut[0]; they are sliced away below.
        ids = jnp.pad(ids, (0, n_pad - n_tok))

    scale = math.sqrt(d_model)
    kernel = functools.partial(
        _embedding_kernel, scale=scale, t_tile=t_tile, n_slots=n_slots, vocab=vocab)

    out_flat = pl.pallas_call(
        kernel,
        out_shape=jax.ShapeDtypeStruct((n_pad, d_model), lut.dtype),
        grid_spec=pltpu.PrefetchScalarGridSpec(
            num_scalar_prefetch=1,                          # ids -> SMEM
            grid=(n_pad // t_tile,),
            in_specs=[pl.BlockSpec(memory_space=pl.ANY)],   # lut stays in HBM
            out_specs=pl.BlockSpec((t_tile, d_model), lambda i, ids_ref: (i, 0)),
            scratch_shapes=[
                pltpu.VMEM((t_tile, d_model), lut.dtype),   # gather slab
                pltpu.SemaphoreType.DMA((n_slots,)),        # DMA slot ring
            ],
        ),
        compiler_params=pltpu.CompilerParams(
            dimension_semantics=("parallel",)),             # shard token tiles across TCs
    )(ids, lut)

    return out_flat[:n_tok].reshape(batch, seq, d_model)


if __name__ == "__main__":
    # Small deterministic setup consistent with the module's __init__ shapes.
    d_model = 128
    vocab = 64
    batch, seq = 2, 8

    key = jax.random.PRNGKey(0)
    k_lut, k_ids, k_ids2 = jax.random.split(key, 3)

    # nn.Embedding(vocab, d_model) weight, initialized deterministically.
    lut = jax.random.normal(k_lut, (vocab, d_model), dtype=jnp.float32)
    # Integer token ids (PyTorch would use int64; int32 suffices on TPU).
    x = jax.random.randint(k_ids, (batch, seq), 0, vocab, dtype=jnp.int32)

    out = embeddings_forward(x, lut)
    out = jax.block_until_ready(out)

    # Reference check against plain-JAX gather (same semantics as nn.Embedding).
    ref = lut[x] * math.sqrt(d_model)
    assert out.shape == (batch, seq, d_model)
    assert out.dtype == jnp.float32
    assert jnp.allclose(out, ref, atol=1e-6, rtol=1e-6)

    # Second shape: exercises multi-tile grid + tail padding (n_tok not a
    # multiple of the token tile).
    batch2, seq2 = 3, 50
    x2 = jax.random.randint(k_ids2, (batch2, seq2), 0, vocab, dtype=jnp.int32)
    out2 = jax.block_until_ready(embeddings_forward(x2, lut))
    ref2 = lut[x2] * math.sqrt(d_model)
    assert out2.shape == (batch2, seq2, d_model)
    assert jnp.allclose(out2, ref2, atol=1e-6, rtol=1e-6)

    print("KERNEL_OK")
</pallas_src>

<mosaic_0001>
module attributes {stable_mosaic.version = 11 : i64} {
  func.func @_embedding_kernel(%arg0: i32, %arg1: memref<16xi32, #tpu.memory_space<smem>>, %arg2: memref<64x128xf32, #tpu.memory_space<any>>, %arg3: memref<16x128xf32, #tpu.memory_space<vmem>>, %arg4: memref<16x128xf32, #tpu.memory_space<vmem>>, %arg5: memref<8x!tpu.dma_semaphore, #tpu.memory_space<semaphore_mem>>) attributes {dimension_semantics = [#tpu.dimension_semantics<parallel>], iteration_bounds = array<i64: 1>, scalar_prefetch = 1 : i64, scratch_operands = 2 : i64, tpu.core_type = #tpu.core_type<tc>, window_params = [{}, {transform_indices = @transform_1, window_bounds = array<i64: 16, 128>}]} {
    %c16_i32 = arith.constant 16 : i32
    %0 = arith.muli %arg0, %c16_i32 : i32
    %c0_i32 = arith.constant 0 : i32
    %c8_i32 = arith.constant 8 : i32
    %1 = arith.addi %c0_i32, %c8_i32 : i32
    %c1_i32 = arith.constant 1 : i32
    scf.for %arg6 = %c0_i32 to %1 step %c1_i32  : i32 {
      %c1_i32_8 = arith.constant 1 : i32
      %7 = arith.muli %arg6, %c1_i32_8 : i32
      %c0_i32_9 = arith.constant 0 : i32
      %8 = arith.addi %c0_i32_9, %7 : i32
      %c7_i32 = arith.constant 7 : i32
      %9 = arith.andi %8, %c7_i32 : i32
      %10 = arith.addi %0, %8 : i32
      %11 = arith.index_cast %10 : i32 to index
      %12 = memref.load %arg1[%11] : memref<16xi32, #tpu.memory_space<smem>>
      %c0_i32_10 = arith.constant 0 : i32
      %13 = arith.maxsi %12, %c0_i32_10 : i32
      %c63_i32 = arith.constant 63 : i32
      %14 = arith.minsi %13, %c63_i32 : i32
      %c0_i32_11 = arith.constant 0 : i32
      %15 = tpu.memref_slice %arg2[%14, %c0_i32_11] : memref<64x128xf32, #tpu.memory_space<any>> -> memref<1x128xf32, #tpu.memory_space<any>>
      %c0_i32_12 = arith.constant 0 : i32
      %16 = tpu.memref_slice %arg4[%8, %c0_i32_12] : memref<16x128xf32, #tpu.memory_space<vmem>> -> memref<1x128xf32, #tpu.memory_space<vmem>>
      %17 = tpu.memref_slice %arg5[%9] : memref<8x!tpu.dma_semaphore, #tpu.memory_space<semaphore_mem>> -> memref<1x!tpu.dma_semaphore, #tpu.memory_space<semaphore_mem>>
      %18 = tpu.memref_squeeze %17 : memref<1x!tpu.dma_semaphore, #tpu.memory_space<semaphore_mem>> -> memref<!tpu.dma_semaphore, #tpu.memory_space<semaphore_mem>>
      tpu.enqueue_dma source(%15 : memref<1x128xf32, #tpu.memory_space<any>>) target(%16 : memref<1x128xf32, #tpu.memory_space<vmem>>) target_semaphore(%18 : memref<!tpu.dma_semaphore, #tpu.memory_space<semaphore_mem>>)
    }
    %c8_i32_0 = arith.constant 8 : i32
    %c0_i32_1 = arith.constant 0 : i32
    %c16_i32_2 = arith.constant 16 : i32
    %2 = arith.addi %c0_i32_1, %c16_i32_2 : i32
    %c1_i32_3 = arith.constant 1 : i32
    scf.for %arg6 = %c0_i32_1 to %2 step %c1_i32_3  : i32 {
      %c1_i32_8 = arith.constant 1 : i32
      %7 = arith.muli %arg6, %c1_i32_8 : i32
      %c0_i32_9 = arith.constant 0 : i32
      %8 = arith.addi %c0_i32_9, %7 : i32
      %c7_i32 = arith.constant 7 : i32
      %9 = arith.andi %8, %c7_i32 : i32
      %c0_i32_10 = arith.constant 0 : i32
      %c0_i32_11 = arith.constant 0 : i32
      %10 = tpu.memref_slice %arg2[%c0_i32_10, %c0_i32_11] : memref<64x128xf32, #tpu.memory_space<any>> -> memref<1x128xf32, #tpu.memory_space<any>>
      %c0_i32_12 = arith.constant 0 : i32
      %11 = tpu.memref_slice %arg4[%8, %c0_i32_12] : memref<16x128xf32, #tpu.memory_space<vmem>> -> memref<1x128xf32, #tpu.memory_space<vmem>>
      %12 = tpu.memref_slice %arg5[%9] : memref<8x!tpu.dma_semaphore, #tpu.memory_space<semaphore_mem>> -> memref<1x!tpu.dma_semaphore, #tpu.memory_space<semaphore_mem>>
      %13 = tpu.memref_squeeze %12 : memref<1x!tpu.dma_semaphore, #tpu.memory_space<semaphore_mem>> -> memref<!tpu.dma_semaphore, #tpu.memory_space<semaphore_mem>>
      tpu.wait_dma2 semaphore(%13 : memref<!tpu.dma_semaphore, #tpu.memory_space<semaphore_mem>>) src(%10 : memref<1x128xf32, #tpu.memory_space<any>>) dst(%11 : memref<1x128xf32, #tpu.memory_space<vmem>>)
      %c8_i32_13 = arith.constant 8 : i32
      %14 = arith.addi %8, %c8_i32_13 : i32
      %c16_i32_14 = arith.constant 16 : i32
      %15 = arith.cmpi slt, %14, %c16_i32_14 : i32
      %16 = arith.extui %15 : i1 to i32
      %c0_i32_15 = arith.constant 0 : i32
      %17 = arith.cmpi ne, %16, %c0_i32_15 : i32
      scf.if %17 {
        %c8_i32_16 = arith.constant 8 : i32
        %18 = arith.addi %8, %c8_i32_16 : i32
        %19 = arith.addi %0, %18 : i32
        %20 = arith.index_cast %19 : i32 to index
        %21 = memref.load %arg1[%20] : memref<16xi32, #tpu.memory_space<smem>>
        %c0_i32_17 = arith.constant 0 : i32
        %22 = arith.maxsi %21, %c0_i32_17 : i32
        %c63_i32 = arith.constant 63 : i32
        %23 = arith.minsi %22, %c63_i32 : i32
        %c0_i32_18 = arith.constant 0 : i32
        %24 = tpu.memref_slice %arg2[%23, %c0_i32_18] : memref<64x128xf32, #tpu.memory_space<any>> -> memref<1x128xf32, #tpu.memory_space<any>>
        %c0_i32_19 = arith.constant 0 : i32
        %25 = tpu.memref_slice %arg4[%18, %c0_i32_19] : memref<16x128xf32, #tpu.memory_space<vmem>> -> memref<1x128xf32, #tpu.memory_space<vmem>>
        %26 = tpu.memref_slice %arg5[%9] : memref<8x!tpu.dma_semaphore, #tpu.memory_space<semaphore_mem>> -> memref<1x!tpu.dma_semaphore, #tpu.memory_space<semaphore_mem>>
        %27 = tpu.memref_squeeze %26 : memref<1x!tpu.dma_semaphore, #tpu.memory_space<semaphore_mem>> -> memref<!tpu.dma_semaphore, #tpu.memory_space<semaphore_mem>>
        tpu.enqueue_dma source(%24 : memref<1x128xf32, #tpu.memory_space<any>>) target(%25 : memref<1x128xf32, #tpu.memory_space<vmem>>) target_semaphore(%27 : memref<!tpu.dma_semaphore, #tpu.memory_space<semaphore_mem>>)
      } else {
      }
    }
    %c16_i32_4 = arith.constant 16 : i32
    %c0 = arith.constant 0 : index
    %c0_5 = arith.constant 0 : index
    %3 = vector.load %arg4[%c0, %c0_5] : memref<16x128xf32, #tpu.memory_space<vmem>>, vector<16x128xf32>
    %cst = arith.constant 11.3137083 : f32
    %4 = vector.broadcast %cst : f32 to vector<16x128xf32>
    %5 = arith.mulf %3, %4 : vector<16x128xf32>
    %c0_6 = arith.constant 0 : index
    %c0_7 = arith.constant 0 : index
    %6 = vector.load %arg3[%c0_6, %c0_7] : memref<16x128xf32, #tpu.memory_space<vmem>>, vector<16x128xf32>
    tpu.vector_store %arg3[%c0_6, %c0_7], %5 {strides = array<i32>} : memref<16x128xf32, #tpu.memory_space<vmem>>, vector<16x128xf32>,
    return
  }
  func.func @transform_1(%arg0: i32, %arg1: memref<16xi32, #tpu.memory_space<smem>>) -> (i32, i32) {
    %c0_i32 = arith.constant 0 : i32
    %c0_i32_0 = arith.constant 0 : i32
    return %arg0, %c0_i32 : i32, i32
  }
}

</mosaic_0001>

<llo_original>
// kernel: tpu_custom_call.1
$region0: #{tpu_custom_call.1}
  #allocation0 [shape = 'u32[]', space=smem, size = 0x4, offset = 0x4, fixed_abs, tag = 'smem constant byte address 0x4 - core index']
  #allocation1 [shape = 'u32[72,128]{1,0:T(1,128)}', space=vmem, size = 0x9000, scoped, tag = 'internal scratch']
  #allocation2 [shape = 'f32[16,128]{1,0:T(8,128)}', space=vmem, size = 0x2000, scoped, tag = 'scratch operand']
  #allocation3 [shape = 's32[8]{0}', space=sflag, size = 0x20, scoped, tag = 'scratch operand']
  #allocation4 [shape = 's32[1]{0}', space=sflag, size = 0x4, scoped, tag = 'scoped memory for tpu_custom_call.1']
  #allocation5 [shape = 'u8[512]{0}', space=smem, size = 0x200, scoped, tag = 'prefetched SMEM operand 0']
  #allocation8 [shape = 's32[]', space=sflag, size = 0x4, offset = 0, fixed_abs, tag = 'sflag constant byte address 0x0 - dummy sync flag']
  #allocation9 [shape = 's32[]', space=sflag, size = 0x4, offset = 0, fixed_abs, tag = 'sflag constant byte address 0x0 - dummy sync flag']
  #allocation10 [shape = 'u32[]', space=smem, size = 0x4, offset = 0x44, fixed_abs, tag = 'smem constant byte address 0x44 - assertion arg 0']
  #allocation11 [shape = 'u32[]', space=smem, size = 0x4, offset = 0x48, fixed_abs, tag = 'smem constant byte address 0x48 - assertion arg 1']
  #allocation12 [shape = 's32[]', space=sflag, size = 0x4, offset = 0, fixed_abs, tag = 'sflag constant byte address 0x0 - dummy sync flag']
  #allocation13 [shape = 's32[]', space=sflag, size = 0x4, offset = 0, fixed_abs, tag = 'sflag constant byte address 0x0 - dummy sync flag']
  %s0 = inlined_call_operand.hbm [shape: s32[16], index: 0, kind: input, shape index: {}]
  %s1 = inlined_call_operand.hbm [shape: f32[64,128], index: 1, kind: input, shape index: {}]
  %s2 = inlined_call_operand.hbm [shape: f32[16,128], index: 2, kind: output, shape index: {}]
  %s3 = sld [smem:[#allocation0]]
  $region36: #{tpu_custom_call.1} parent=0
    _
  %s5 = ssub.s32 1, %s3
  %s6 = scalar_select 0, %s5, %s3
  %s8 = sshll.u32 %s0, 4
  %s9 = int_to_ptr.hbm [resolvable:$true] %s8
  %11 = dma.hbm_to_smem %s9, 16, [#allocation5], [#allocation4]
  %13 = dma.done [#allocation4], 16
  %14 = sfence
  $region1: #{tpu_custom_call.1} parent=0
    #allocation6 [shape = 'u8[8192]{0}', space=vmem, size = 0x2000, scoped, tag = 'output window, operand 0, single buffered']
    #allocation7 [shape = 's32[1]{0}', space=sflag, size = 0x4, scoped, tag = 'scoped memory for tpu_custom_call.1']
    %15 = vsyncpa [#allocation7], 0
    %s16 = smul.u32 0, 16
    loop: start=0, step=1, limit=8
    $region2: #{tpu_custom_call.1} parent=1 // loop_pre_header
      _
    $region3: #{tpu_custom_call.1} parent=1 // loop_header
      %s18 = sphi 0, %s22
      %p19 = scmp.ge.s32.totalorder %s18, 8
    $region4: #{tpu_custom_call.1} parent=1 // loop_header_branch
      %21 = sbr.rel (%p19) target = $region8
    $region5: #{tpu_custom_call.1} parent=1 // loop_body
      %s23 = sand.u32 %s18, 7
      %s24 = sadd.s32 %s16, %s18
      %s25 = sld [smem:[#allocation5 + %s24]]
      %p26 = scmp.gt.s32.totalorder %s25, 0
      %s27 = scalar_select %p26, %s25, 0
      %p28 = scmp.lt.s32.totalorder %s27, 63
      %s29 = scalar_select %p28, %s27, 63
      %s30 = scalar_lea.hbm %s1, %s29
      %s31 = scalar_lea.vmem [#allocation2], %s18
      %s32 = scalar_lea.sflag [#allocation3], %s23
      // Predicated region
      $region9: #{tpu_custom_call.1} parent=5 // pred_check
        _
      $region10: #{tpu_custom_call.1} parent=5 // pred_check_branch
        %34 = sbr.rel target = $region12
      $region11: #{tpu_custom_call.1} parent=5 // pred_region
        %35 = sst [smem:[#allocation10]] [#allocation9]
        %36 = sst [smem:[#allocation11]] [#allocation8]
      $region12: #{tpu_custom_call.1} parent=5 // pred_fallthru
        _
      %38 = shalt.err (0)
      %s40 = sshll.u32 %s30, 4
      %s41 = int_to_ptr.hbm [resolvable:$true] %s40
      %s42 = sshll.u32 %s31, 4
      %s43 = int_to_ptr.vmem [resolvable:$true] %s42
      %45 = dma.hbm_to_vmem [thread:$0]  %s41, 16, %s43, %s32
    $region6: #{tpu_custom_call.1} parent=1 // loop_footer
      %s22 = sadd.s32 1, %s18
    $region7: #{tpu_custom_call.1} parent=1 // loop_footer_branch
      %17 = sbr.rel target = $region3
    $region8: #{tpu_custom_call.1} parent=1 // loop_exit
      _
    loop: start=0, step=1, limit=16
    $region13: #{tpu_custom_call.1} parent=1 // loop_pre_header
      _
    $region14: #{tpu_custom_call.1} parent=1 // loop_header
      %s47 = sphi 0, %s51
      %p48 = scmp.ge.s32.totalorder %s47, 16
    $region15: #{tpu_custom_call.1} parent=1 // loop_header_branch
      %50 = sbr.rel (%p48) target = $region19
    $region16: #{tpu_custom_call.1} parent=1 // loop_body
      %s52 = sand.u32 %s47, 7
      %s53 = scalar_lea.sflag [#allocation3], %s52
      %s54 = smul.u32 1, 1
      %s55 = sshll.u32 %s54, 4
      %56 = dma.done %s53, %s55
      %s57 = sadd.s32 %s47, 8
      %p58 = scmp.lt.s32.totalorder %s57, 16
      // Predicated region
      $region20: #{tpu_custom_call.1} parent=16 // pred_check
        %p59 = pneg %p58
      $region21: #{tpu_custom_call.1} parent=16 // pred_check_branch
        %61 = sbr.rel (%p59) target = $region23
      $region22: #{tpu_custom_call.1} parent=16 // pred_region
        %s62 = sadd.s32 %s16, %s57
        %s63 = sld [smem:[#allocation5 + %s62]]
        %p64 = scmp.gt.s32.totalorder %s63, 0
        %s65 = scalar_select %p64, %s63, 0
        %p66 = scmp.lt.s32.totalorder %s65, 63
        %s67 = scalar_select %p66, %s65, 63
        %s68 = scalar_lea.hbm %s1, %s67
        %s69 = scalar_lea.vmem [#allocation2], %s57
        // Predicated region
        $region24: #{tpu_custom_call.1} parent=22 // pred_check
          _
        $region25: #{tpu_custom_call.1} parent=22 // pred_check_branch
          %71 = sbr.rel target = $region27
        $region26: #{tpu_custom_call.1} parent=22 // pred_region
          %72 = sst [smem:[#allocation10]] [#allocation13]
          %73 = sst [smem:[#allocation11]] [#allocation12]
        $region27: #{tpu_custom_call.1} parent=22 // pred_fallthru
          _
        %75 = shalt.err (0)
        %s77 = sshll.u32 %s68, 4
        %s78 = int_to_ptr.hbm [resolvable:$true] %s77
        %s79 = sshll.u32 %s69, 4
        %s80 = int_to_ptr.vmem [resolvable:$true] %s79
        %82 = dma.hbm_to_vmem [thread:$0]  %s78, 16, %s80, %s53
      $region23: #{tpu_custom_call.1} parent=16 // pred_fallthru
        _
    $region17: #{tpu_custom_call.1} parent=1 // loop_footer
      %s51 = sadd.s32 1, %s47
    $region18: #{tpu_custom_call.1} parent=1 // loop_footer_branch
      %46 = sbr.rel target = $region14
    $region19: #{tpu_custom_call.1} parent=1 // loop_exit
      _
    %v83 = vld [vmem:[#allocation2] sm:$0xff]
    %v84 = vld [vmem:[#allocation2 + $0x8] sm:$0xff]
    %v85 = vmul.f32 %v83, 11.313708
    %v86 = vmul.f32 %v84, 11.313708
    %87 = vst [vmem:[#allocation6] sm:$0xff] %v85
    %88 = vst [vmem:[#allocation6 + $0x8] sm:$0xff] %v86
    // Predicated region
    $region28: #{tpu_custom_call.1} parent=1 // pred_check
      _
    $region29: #{tpu_custom_call.1} parent=1 // pred_check_branch
      %90 = sbr.rel (0) target = $region31
    $region30: #{tpu_custom_call.1} parent=1 // pred_region
      %92 = vsyncadd [#allocation7], 0
      %s93 = sshll.u32 [#allocation6], 4
      %s94 = int_to_ptr.vmem [resolvable:$true] %s93
      %s95 = sshll.u32 %s2, 4
      %s96 = int_to_ptr.hbm [resolvable:$true] %s95
      %101 = dma.vmem_to_hbm [thread:$0]  %s94, 256, %s96, [#allocation7], 128, 128, 8
    $region31: #{tpu_custom_call.1} parent=1 // pred_fallthru
      _
    // Predicated region
    $region32: #{tpu_custom_call.1} parent=1 // pred_check
      _
    $region33: #{tpu_custom_call.1} parent=1 // pred_check_branch
      %103 = sbr.rel (0) target = $region35
    $region34: #{tpu_custom_call.1} parent=1 // pred_region
      %105 = dma.done [#allocation7], 256
    $region35: #{tpu_custom_call.1} parent=1 // pred_fallthru
      _
    %106 = vsyncpa [#allocation7], 1
  %107 = vsyncmov [#allocation3]
  %s108 = vpop.sfrf %107
  %p109 = scmp.eq.s32.totalorder %s108, 0
  %p110 = pneg %p109
  %112 = shalt.err (%p110)
  %s113 = scalar_lea.sflag [#allocation3], 1
  %114 = vsyncmov %s113
  %s115 = vpop.sfrf %114
  %p116 = scmp.eq.s32.totalorder %s115, 0
  %p117 = pneg %p116
  %119 = shalt.err (%p117)
  %s120 = scalar_lea.sflag [#allocation3], 2
  %121 = vsyncmov %s120
  %s122 = vpop.sfrf %121
  %p123 = scmp.eq.s32.totalorder %s122, 0
  %p124 = pneg %p123
  %126 = shalt.err (%p124)
  %s127 = scalar_lea.sflag [#allocation3], 3
  %128 = vsyncmov %s127
  %s129 = vpop.sfrf %128
  %p130 = scmp.eq.s32.totalorder %s129, 0
  %p131 = pneg %p130
  %133 = shalt.err (%p131)
  %s134 = scalar_lea.sflag [#allocation3], 4
  %135 = vsyncmov %s134
  %s136 = vpop.sfrf %135
  %p137 = scmp.eq.s32.totalorder %s136, 0
  %p138 = pneg %p137
  %140 = shalt.err (%p138)
  %s141 = scalar_lea.sflag [#allocation3], 5
  %142 = vsyncmov %s141
  %s143 = vpop.sfrf %142
  %p144 = scmp.eq.s32.totalorder %s143, 0
  %p145 = pneg %p144
  %147 = shalt.err (%p145)
  %s148 = scalar_lea.sflag [#allocation3], 6
  %149 = vsyncmov %s148
  %s150 = vpop.sfrf %149
  %p151 = scmp.eq.s32.totalorder %s150, 0
  %p152 = pneg %p151
  %154 = shalt.err (%p152)
  %s155 = scalar_lea.sflag [#allocation3], 7
  %156 = vsyncmov %s155
  %s157 = vpop.sfrf %156
  %p158 = scmp.eq.s32.totalorder %s157, 0
  %p159 = pneg %p158
  %161 = shalt.err (%p159)

</llo_original>
